<compile_context>
chip_gen: v7x
topology: tpu7x:2x2x1
jax: 0.10.0
libtpu: 0.0.40
codegen_flags: <defaults>
</compile_context>

<pallas_src>
import functools

import jax
import jax.numpy as jnp
from jax.experimental import pallas as pl
from jax.experimental.pallas import tpu as pltpu

_LANES = 128
_SUBLANES = 8
_SLAB = _SUBLANES * _LANES            # 1024 elements per (8, 128) vreg slab

# ~4 MiB per input block: big enough to amortize per-step overhead on v5e/v6e/v7x,
# small enough that 2 inputs x 2 pipeline buffers stay far below every generation's VMEM.
_TARGET_BLOCK_BYTES = 4 * 1024 * 1024
# Below this much data per batch element, pack several batch rows per grid step.
_SMALL_BATCH_BYTES = 1 * 1024 * 1024


def _cdiv(a: int, b: int) -> int:
    return -(-a // b)


def _largest_divisor_leq(n: int, k: int) -> int:
    k = max(1, min(n, k))
    while n % k:
        k -= 1
    return k


def _dice_kernel(pred_ref, tgt_ref, out_ref, inter_acc, union_acc, *,
                 smooth, rem_slabs):
    """One grid step of the streaming dice reduction.

    pred_ref / tgt_ref : (Bb, tile_slabs, 8, 128) native-dtype input block.
    out_ref            : (Bb, 128) f32 per-batch dice (written on the last step).
    inter_acc/union_acc: (Bb, 8, 128) f32 VMEM per-lane accumulators.
    rem_slabs          : static valid slab count of the last (ragged) tile, or None.
    """
    j = pl.program_id(1)
    last = pl.num_programs(1) - 1

    @pl.when(j == 0)
    def _init():
        inter_acc[...] = jnp.zeros_like(inter_acc)
        union_acc[...] = jnp.zeros_like(union_acc)

    native = (pred_ref.dtype == tgt_ref.dtype and
              pred_ref.dtype in (jnp.float32, jnp.bfloat16))

    def accumulate(p, t):
        if native:
            # Elementwise in the native dtype (bf16 VALU on v6e/v7x), single upcast
            # for f32 accumulation — fewer VALU ops per HBM byte for bf16 inputs.
            prod = (p * t).astype(jnp.float32)
            ssum = (p + t).astype(jnp.float32)
        else:
            pf = p.astype(jnp.float32)
            tf = t.astype(jnp.float32)
            prod = pf * tf
            ssum = pf + tf
        # Fold the slab axis with plain VPU adds; no cross-lane (XLU) work in the hot loop.
        inter_acc[...] += jnp.sum(prod, axis=1)
        union_acc[...] += jnp.sum(ssum, axis=1)

    if rem_slabs is None:
        accumulate(pred_ref[...], tgt_ref[...])
    else:
        # Ragged last tile: read only the valid leading slabs via a static ref slice;
        # the out-of-bounds tail of the block is never touched (no mask needed).
        @pl.when(j != last)
        def _full():
            accumulate(pred_ref[...], tgt_ref[...])

        @pl.when(j == last)
        def _ragged():
            accumulate(pred_ref[:, :rem_slabs], tgt_ref[:, :rem_slabs])

    @pl.when(j == last)
    def _finalize():
        # One cross-sublane + cross-lane reduction per batch row, once per kernel.
        inter = jnp.sum(inter_acc[...], axis=1)                # (Bb, 128)
        inter = jnp.sum(inter, axis=1, keepdims=True)          # (Bb, 1)
        union = jnp.sum(union_acc[...], axis=1)
        union = jnp.sum(union, axis=1, keepdims=True)
        dice = (2.0 * inter + smooth) / (union + smooth)       # (Bb, 1)
        out_ref[...] = jnp.broadcast_to(dice, out_ref.shape)


def dice_loss(predictions: jax.Array, targets: jax.Array,
              smooth: float = 1.0) -> jax.Array:
    """Pallas equivalent of DiceLoss.forward (predictions, targets: [B, H, W])."""
    assert predictions.shape == targets.shape
    batch_size = predictions.shape[0]

    # Flatten exactly like .reshape(batch_size, -1); keep native dtypes through the DMA.
    pred_flat = predictions.reshape(batch_size, -1)
    tgt_flat = targets.reshape(batch_size, -1)
    if not jnp.issubdtype(tgt_flat.dtype, jnp.floating):
        # Integer {0,1} masks are exact in any float dtype (Dice never uses large labels).
        tgt_flat = tgt_flat.astype(pred_flat.dtype)

    n = pred_flat.shape[1]
    itemsize = max(pred_flat.dtype.itemsize, tgt_flat.dtype.itemsize)

    # ---- slab geometry (no full-array padding in the common case) ----------------------
    slabs = _cdiv(n, _SLAB)
    n_slab = slabs * _SLAB
    if n_slab != n:
        # TODO(synk): sub-slab tails (n % 1024 != 0) still fall back to a padded copy of
        # both inputs; a flat-layout masked kernel would avoid that extra HBM read+write.
        pad = ((0, 0), (0, n_slab - n))
        pred_flat = jnp.pad(pred_flat, pad)
        tgt_flat = jnp.pad(tgt_flat, pad)

    slab_bytes = _SLAB * itemsize
    per_batch_bytes = slabs * slab_bytes
    target_slabs = max(1, _TARGET_BLOCK_BYTES // slab_bytes)   # dtype-scaled tile depth

    if per_batch_bytes <= _SMALL_BATCH_BYTES and batch_size > 1:
        # Small images / large batch: several batch rows per grid step so DMAs stay large.
        bb = _largest_divisor_leq(batch_size, _TARGET_BLOCK_BYTES // per_batch_bytes)
        tile_slabs = slabs
        num_tiles = 1
        rem_slabs = None
    else:
        bb = 1
        tile_slabs = min(slabs, target_slabs)
        num_tiles = _cdiv(slabs, tile_slabs)
        rem = slabs - (num_tiles - 1) * tile_slabs
        rem_slabs = None if rem == tile_slabs else rem         # ragged last tile

    # Free (contiguous) reshape: spatial data fills full (8, 128) vreg slabs even for small B.
    pred_4d = pred_flat.reshape(batch_size, slabs, _SUBLANES, _LANES)
    tgt_4d = tgt_flat.reshape(batch_size, slabs, _SUBLANES, _LANES)

    in_block = (bb, tile_slabs, _SUBLANES, _LANES)
    block_in_bytes = bb * tile_slabs * _SLAB * (pred_flat.dtype.itemsize +
                                                tgt_flat.dtype.itemsize)
    # Double-buffered inputs + headroom; explicit so v5e's 16 MiB scoped default never bites.
    vmem_limit = int(max(32 * 1024 * 1024, 2 * block_in_bytes + 4 * 1024 * 1024))

    # TODO(synk): on v7x with batch_size == 1 the batch grid axis cannot feed both
    # TensorCores; splitting the tile axis into two parallel halves with partial-sum
    # outputs (combined in the wrapper) would recover the idle core.
    out = pl.pallas_call(
        functools.partial(_dice_kernel, smooth=float(smooth), rem_slabs=rem_slabs),
        out_shape=jax.ShapeDtypeStruct((batch_size, _LANES), jnp.float32),
        grid=(batch_size // bb, num_tiles),
        in_specs=[
            pl.BlockSpec(in_block, lambda b, j: (b, j, 0, 0)),
            pl.BlockSpec(in_block, lambda b, j: (b, j, 0, 0)),
        ],
        out_specs=pl.BlockSpec((bb, _LANES), lambda b, j: (b, 0)),
        scratch_shapes=[
            pltpu.VMEM((bb, _SUBLANES, _LANES), jnp.float32),
            pltpu.VMEM((bb, _SUBLANES, _LANES), jnp.float32),
        ],
        compiler_params=pltpu.CompilerParams(
            dimension_semantics=("parallel", "arbitrary"),
            vmem_limit_bytes=vmem_limit),
    )(pred_4d, tgt_4d)

    # Tiny (B,)-sized finish in the wrapper keeps the batch grid axis megacore-parallel.
    dice = out[:, 0]
    return 1.0 - jnp.mean(dice)


def _dice_loss_ref(predictions, targets, smooth=1.0):
    b = predictions.shape[0]
    p = predictions.reshape(b, -1).astype(jnp.float32)
    t = targets.reshape(b, -1).astype(jnp.float32)
    inter = jnp.sum(p * t, axis=1)
    union = jnp.sum(p, axis=1) + jnp.sum(t, axis=1)
    dice = (2.0 * inter + smooth) / (union + smooth)
    return 1.0 - jnp.mean(dice)


if __name__ == "__main__":
    key = jax.random.PRNGKey(0)
    kp, kt = jax.random.split(key)

    B, H, W = 2, 16, 16
    # Predicted probabilities in [0, 1].
    predictions = jax.nn.sigmoid(jax.random.normal(kp, (B, H, W), jnp.float32))
    # Binary target masks.
    targets = (jax.random.uniform(kt, (B, H, W)) > 0.5).astype(jnp.float32)

    loss = jax.block_until_ready(dice_loss(predictions, targets, smooth=1.0))
    ref = jax.block_until_ready(_dice_loss_ref(predictions, targets, smooth=1.0))

    assert jnp.allclose(loss, ref, atol=1e-5, rtol=1e-5), (loss, ref)
    print("KERNEL_OK")
</pallas_src>

<mosaic_0001>
module attributes {stable_mosaic.version = 11 : i64} {
  func.func @_dice_kernel(%arg0: i32, %arg1: i32, %arg2: memref<2x1x8x128xf32, #tpu.memory_space<vmem>>, %arg3: memref<2x1x8x128xf32, #tpu.memory_space<vmem>>, %arg4: memref<2x128xf32, #tpu.memory_space<vmem>>, %arg5: memref<2x8x128xf32, #tpu.memory_space<vmem>>, %arg6: memref<2x8x128xf32, #tpu.memory_space<vmem>>) attributes {dimension_semantics = [#tpu.dimension_semantics<parallel>, #tpu.dimension_semantics<arbitrary>], iteration_bounds = array<i64: 1, 1>, scalar_prefetch = 0 : i64, scratch_operands = 2 : i64, tpu.core_type = #tpu.core_type<tc>, window_params = [{transform_indices = @transform_0, window_bounds = array<i64: 2, 1, 8, 128>}, {transform_indices = @transform_1, window_bounds = array<i64: 2, 1, 8, 128>}, {transform_indices = @transform_2, window_bounds = array<i64: 2, 128>}]} {
    %c0_i32 = arith.constant 0 : i32
    %0 = arith.cmpi eq, %arg1, %c0_i32 : i32
    %1 = arith.extui %0 : i1 to i32
    %c0_i32_0 = arith.constant 0 : i32
    %2 = arith.cmpi ne, %1, %c0_i32_0 : i32
    scf.if %2 {
      %cst_23 = arith.constant 0.000000e+00 : f32
      %18 = vector.broadcast %cst_23 : f32 to vector<2x8x128xf32>
      %c0_24 = arith.constant 0 : index
      %c0_25 = arith.constant 0 : index
      %c0_26 = arith.constant 0 : index
      %19 = vector.load %arg5[%c0_24, %c0_25, %c0_26] : memref<2x8x128xf32, #tpu.memory_space<vmem>>, vector<2x8x128xf32>
      tpu.vector_store %arg5[%c0_24, %c0_25, %c0_26], %18 {strides = array<i32>} : memref<2x8x128xf32, #tpu.memory_space<vmem>>, vector<2x8x128xf32>,
      %cst_27 = arith.constant 0.000000e+00 : f32
      %20 = vector.broadcast %cst_27 : f32 to vector<2x8x128xf32>
      %c0_28 = arith.constant 0 : index
      %c0_29 = arith.constant 0 : index
      %c0_30 = arith.constant 0 : index
      %21 = vector.load %arg6[%c0_28, %c0_29, %c0_30] : memref<2x8x128xf32, #tpu.memory_space<vmem>>, vector<2x8x128xf32>
      tpu.vector_store %arg6[%c0_28, %c0_29, %c0_30], %20 {strides = array<i32>} : memref<2x8x128xf32, #tpu.memory_space<vmem>>, vector<2x8x128xf32>,
    } else {
    }
    %c0 = arith.constant 0 : index
    %c0_1 = arith.constant 0 : index
    %c0_2 = arith.constant 0 : index
    %c0_3 = arith.constant 0 : index
    %3 = vector.load %arg2[%c0, %c0_1, %c0_2, %c0_3] : memref<2x1x8x128xf32, #tpu.memory_space<vmem>>, vector<2x1x8x128xf32>
    %c0_4 = arith.constant 0 : index
    %c0_5 = arith.constant 0 : index
    %c0_6 = arith.constant 0 : index
    %c0_7 = arith.constant 0 : index
    %4 = vector.load %arg3[%c0_4, %c0_5, %c0_6, %c0_7] : memref<2x1x8x128xf32, #tpu.memory_space<vmem>>, vector<2x1x8x128xf32>
    %5 = arith.mulf %3, %4 : vector<2x1x8x128xf32>
    %6 = arith.addf %3, %4 : vector<2x1x8x128xf32>
    %c0_8 = arith.constant 0 : index
    %c0_9 = arith.constant 0 : index
    %c0_10 = arith.constant 0 : index
    %7 = vector.load %arg5[%c0_8, %c0_9, %c0_10] : memref<2x8x128xf32, #tpu.memory_space<vmem>>, vector<2x8x128xf32>
    %cst = arith.constant dense<0.000000e+00> : vector<2x8x128xf32>
    %8 = vector.multi_reduction <add>, %5, %cst [1] : vector<2x1x8x128xf32> to vector<2x8x128xf32>
    %9 = arith.addf %7, %8 : vector<2x8x128xf32>
    %c0_11 = arith.constant 0 : index
    %c0_12 = arith.constant 0 : index
    %c0_13 = arith.constant 0 : index
    %10 = vector.load %arg5[%c0_11, %c0_12, %c0_13] : memref<2x8x128xf32, #tpu.memory_space<vmem>>, vector<2x8x128xf32>
    tpu.vector_store %arg5[%c0_11, %c0_12, %c0_13], %9 {strides = array<i32>} : memref<2x8x128xf32, #tpu.memory_space<vmem>>, vector<2x8x128xf32>,
    %c0_14 = arith.constant 0 : index
    %c0_15 = arith.constant 0 : index
    %c0_16 = arith.constant 0 : index
    %11 = vector.load %arg6[%c0_14, %c0_15, %c0_16] : memref<2x8x128xf32, #tpu.memory_space<vmem>>, vector<2x8x128xf32>
    %cst_17 = arith.constant dense<0.000000e+00> : vector<2x8x128xf32>
    %12 = vector.multi_reduction <add>, %6, %cst_17 [1] : vector<2x1x8x128xf32> to vector<2x8x128xf32>
    %13 = arith.addf %11, %12 : vector<2x8x128xf32>
    %c0_18 = arith.constant 0 : index
    %c0_19 = arith.constant 0 : index
    %c0_20 = arith.constant 0 : index
    %14 = vector.load %arg6[%c0_18, %c0_19, %c0_20] : memref<2x8x128xf32, #tpu.memory_space<vmem>>, vector<2x8x128xf32>
    tpu.vector_store %arg6[%c0_18, %c0_19, %c0_20], %13 {strides = array<i32>} : memref<2x8x128xf32, #tpu.memory_space<vmem>>, vector<2x8x128xf32>,
    %c0_i32_21 = arith.constant 0 : i32
    %15 = arith.cmpi eq, %arg1, %c0_i32_21 : i32
    %16 = arith.extui %15 : i1 to i32
    %c0_i32_22 = arith.constant 0 : i32
    %17 = arith.cmpi ne, %16, %c0_i32_22 : i32
    scf.if %17 {
      %c0_23 = arith.constant 0 : index
      %c0_24 = arith.constant 0 : index
      %c0_25 = arith.constant 0 : index
      %18 = vector.load %arg5[%c0_23, %c0_24, %c0_25] : memref<2x8x128xf32, #tpu.memory_space<vmem>>, vector<2x8x128xf32>
      %cst_26 = arith.constant dense<0.000000e+00> : vector<2x128xf32>
      %19 = vector.multi_reduction <add>, %18, %cst_26 [1] : vector<2x8x128xf32> to vector<2x128xf32>
      %cst_27 = arith.constant dense<0.000000e+00> : vector<2xf32>
      %20 = vector.multi_reduction <add>, %19, %cst_27 [1] : vector<2x128xf32> to vector<2xf32>
      %21 = vector.shape_cast %20 : vector<2xf32> to vector<2x1xf32>
      %c0_28 = arith.constant 0 : index
      %c0_29 = arith.constant 0 : index
      %c0_30 = arith.constant 0 : index
      %22 = vector.load %arg6[%c0_28, %c0_29, %c0_30] : memref<2x8x128xf32, #tpu.memory_space<vmem>>, vector<2x8x128xf32>
      %cst_31 = arith.constant dense<0.000000e+00> : vector<2x128xf32>
      %23 = vector.multi_reduction <add>, %22, %cst_31 [1] : vector<2x8x128xf32> to vector<2x128xf32>
      %cst_32 = arith.constant dense<0.000000e+00> : vector<2xf32>
      %24 = vector.multi_reduction <add>, %23, %cst_32 [1] : vector<2x128xf32> to vector<2xf32>
      %25 = vector.shape_cast %24 : vector<2xf32> to vector<2x1xf32>
      %cst_33 = arith.constant 2.000000e+00 : f32
      %26 = vector.broadcast %cst_33 : f32 to vector<2x1xf32>
      %27 = arith.mulf %26, %21 : vector<2x1xf32>
      %cst_34 = arith.constant 1.000000e+00 : f32
      %28 = vector.broadcast %cst_34 : f32 to vector<2x1xf32>
      %29 = arith.addf %27, %28 : vector<2x1xf32>
      %cst_35 = arith.constant 1.000000e+00 : f32
      %30 = vector.broadcast %cst_35 : f32 to vector<2x1xf32>
      %31 = arith.addf %25, %30 : vector<2x1xf32>
      %32 = arith.divf %29, %31 : vector<2x1xf32>
      %33 = vector.shape_cast %32 : vector<2x1xf32> to vector<2x1xf32>
      %34 = vector.broadcast %33 : vector<2x1xf32> to vector<2x128xf32>
      %c0_36 = arith.constant 0 : index
      %c0_37 = arith.constant 0 : index
      %35 = vector.load %arg4[%c0_36, %c0_37] : memref<2x128xf32, #tpu.memory_space<vmem>>, vector<2x128xf32>
      tpu.vector_store %arg4[%c0_36, %c0_37], %34 {strides = array<i32>} : memref<2x128xf32, #tpu.memory_space<vmem>>, vector<2x128xf32>,
    } else {
    }
    return
  }
  func.func @transform_0(%arg0: i32, %arg1: i32) -> (i32, i32, i32, i32) {
    %c0_i32 = arith.constant 0 : i32
    %c0_i32_0 = arith.constant 0 : i32
    %c0_i32_1 = arith.constant 0 : i32
    return %arg0, %arg1, %c0_i32, %c0_i32_0 : i32, i32, i32, i32
  }
  func.func @transform_1(%arg0: i32, %arg1: i32) -> (i32, i32, i32, i32) {
    %c0_i32 = arith.constant 0 : i32
    %c0_i32_0 = arith.constant 0 : i32
    %c0_i32_1 = arith.constant 0 : i32
    return %arg0, %arg1, %c0_i32, %c0_i32_0 : i32, i32, i32, i32
  }
  func.func @transform_2(%arg0: i32, %arg1: i32) -> (i32, i32) {
    %c0_i32 = arith.constant 0 : i32
    %c0_i32_0 = arith.constant 0 : i32
    return %arg0, %c0_i32 : i32, i32
  }
}

</mosaic_0001>

<llo_original>
// kernel: tpu_custom_call.1
$region0: #{tpu_custom_call.1}
  #allocation0 [shape = 'u32[]', space=smem, size = 0x4, offset = 0x4, fixed_abs, tag = 'smem constant byte address 0x4 - core index']
  #allocation1 [shape = 'u32[144,128]{1,0:T(1,128)}', space=vmem, size = 0x12000, scoped, tag = 'internal scratch']
  #allocation2 [shape = 'f32[2,8,128]{2,1,0:T(8,128)}', space=vmem, size = 0x2000, scoped, tag = 'scratch operand']
  #allocation3 [shape = 'f32[2,8,128]{2,1,0:T(8,128)}', space=vmem, size = 0x2000, scoped, tag = 'scratch operand']
  %s0 = inlined_call_operand.hbm [shape: f32[2,1,8,128], index: 0, kind: input, shape index: {}]
  %s1 = inlined_call_operand.hbm [shape: f32[2,1,8,128], index: 1, kind: input, shape index: {}]
  %s2 = inlined_call_operand.hbm [shape: f32[2,128], index: 2, kind: output, shape index: {}]
  %s3 = sld [smem:[#allocation0]]
  $region34: #{tpu_custom_call.1} parent=0
    _
  %s5 = ssub.s32 1, %s3
  %s6 = scalar_select 0, %s5, %s3
  $region1: #{tpu_custom_call.1} parent=0
    #allocation4 [shape = 'u8[8192]{0}', space=vmem, size = 0x2000, scoped, tag = 'input window, operand 0, single buffered']
    #allocation5 [shape = 's32[1]{0}', space=sflag, size = 0x4, scoped, tag = 'scoped memory for tpu_custom_call.1']
    #allocation6 [shape = 's32[1]{0}', space=sflag, size = 0x4, scoped, tag = 'scoped memory for tpu_custom_call.1']
    #allocation7 [shape = 'u8[8192]{0}', space=vmem, size = 0x2000, scoped, tag = 'input window, operand 1, single buffered']
    #allocation8 [shape = 's32[1]{0}', space=sflag, size = 0x4, scoped, tag = 'scoped memory for tpu_custom_call.1']
    #allocation9 [shape = 'u8[1024]{0}', space=vmem, size = 0x400, scoped, tag = 'output window, operand 0, single buffered']
    %7 = vsyncpa [#allocation5], 0
    %8 = vsyncpa [#allocation8], 0
    %9 = vsyncpa [#allocation6], 0
    // Predicated region
    $region2: #{tpu_custom_call.1} parent=1 // pred_check
      _
    $region3: #{tpu_custom_call.1} parent=1 // pred_check_branch
      %11 = sbr.rel (0) target = $region5
    $region4: #{tpu_custom_call.1} parent=1 // pred_region
      %s13 = ssub.s32 256, 256
      %14 = vsyncadd [#allocation5], %s13
      %s15 = sshll.u32 [#allocation4], 4
      %s16 = int_to_ptr.vmem [resolvable:$true] %s15
      %21 = dma.hbm_to_vmem [thread:$0]  %s0, 256, %s16, [#allocation5], 128, 128, 8
    $region5: #{tpu_custom_call.1} parent=1 // pred_fallthru
      _
    // Predicated region
    $region6: #{tpu_custom_call.1} parent=1 // pred_check
      _
    $region7: #{tpu_custom_call.1} parent=1 // pred_check_branch
      %23 = sbr.rel (0) target = $region9
    $region8: #{tpu_custom_call.1} parent=1 // pred_region
      %s25 = ssub.s32 256, 256
      %26 = vsyncadd [#allocation8], %s25
      %s27 = sshll.u32 [#allocation7], 4
      %s28 = int_to_ptr.vmem [resolvable:$true] %s27
      %33 = dma.hbm_to_vmem [thread:$0]  %s1, 256, %s28, [#allocation8], 128, 128, 8
    $region9: #{tpu_custom_call.1} parent=1 // pred_fallthru
      _
    // Predicated region
    $region10: #{tpu_custom_call.1} parent=1 // pred_check
      _
    $region11: #{tpu_custom_call.1} parent=1 // pred_check_branch
      %35 = sbr.rel (0) target = $region13
    $region12: #{tpu_custom_call.1} parent=1 // pred_region
      %36 = dma.done [#allocation5], 256
    $region13: #{tpu_custom_call.1} parent=1 // pred_fallthru
      _
    // Predicated region
    $region14: #{tpu_custom_call.1} parent=1 // pred_check
      _
    $region15: #{tpu_custom_call.1} parent=1 // pred_check_branch
      %38 = sbr.rel (0) target = $region17
    $region16: #{tpu_custom_call.1} parent=1 // pred_region
      %39 = dma.done [#allocation8], 256
    $region17: #{tpu_custom_call.1} parent=1 // pred_fallthru
      _
    %p40 = scmp.eq.s32.totalorder 0, 0
    // Predicated region
    $region18: #{tpu_custom_call.1} parent=1 // pred_check
      %p41 = pneg %p40
    $region19: #{tpu_custom_call.1} parent=1 // pred_check_branch
      %43 = sbr.rel (%p41) target = $region21
    $region20: #{tpu_custom_call.1} parent=1 // pred_region
      %44 = vst [vmem:[#allocation2] sm:$0xff] 0.0
      %45 = vst [vmem:[#allocation2 + $0x8] sm:$0xff] 0.0
      %46 = vst [vmem:[#allocation3] sm:$0xff] 0.0
      %47 = vst [vmem:[#allocation3 + $0x8] sm:$0xff] 0.0
    $region21: #{tpu_custom_call.1} parent=1 // pred_fallthru
      _
    %v48 = vld [vmem:[#allocation4] sm:$0xff]
    %v49 = vld [vmem:[#allocation4 + $0x8] sm:$0xff]
    %v50 = vld [vmem:[#allocation7] sm:$0xff]
    %v51 = vld [vmem:[#allocation7 + $0x8] sm:$0xff]
    %v52 = vmul.f32 %v48, %v50
    %v53 = vmul.f32 %v49, %v51
    %v54 = vadd.f32 %v48, %v50
    %v55 = vadd.f32 %v49, %v51
    %v56 = vld [vmem:[#allocation2] sm:$0xff]
    %v57 = vld [vmem:[#allocation2 + $0x8] sm:$0xff]
    %v58 = vadd.f32 %v52, 0.0
    %v59 = vadd.f32 %v53, 0.0
    %v60 = vadd.f32 %v56, %v58
    %v61 = vadd.f32 %v57, %v59
    %62 = vst [vmem:[#allocation2] sm:$0xff] %v60
    %63 = vst [vmem:[#allocation2 + $0x8] sm:$0xff] %v61
    %v64 = vld [vmem:[#allocation3] sm:$0xff]
    %v65 = vld [vmem:[#allocation3 + $0x8] sm:$0xff]
    %v66 = vadd.f32 %v54, 0.0
    %v67 = vadd.f32 %v55, 0.0
    %v68 = vadd.f32 %v64, %v66
    %v69 = vadd.f32 %v65, %v67
    %70 = vst [vmem:[#allocation3] sm:$0xff] %v68
    %71 = vst [vmem:[#allocation3 + $0x8] sm:$0xff] %v69
    // Predicated region
    $region22: #{tpu_custom_call.1} parent=1 // pred_check
      %p72 = pneg %p40
    $region23: #{tpu_custom_call.1} parent=1 // pred_check_branch
      %74 = sbr.rel (%p72) target = $region25
    $region24: #{tpu_custom_call.1} parent=1 // pred_region
      %v75 = vld [vmem:[#allocation2] sm:$0xff]
      %v76 = vld [vmem:[#allocation2 + $0x8] sm:$0xff]
      %v77 = vrot.slane %v75, 4
      %v78 = vadd.f32 %v75, %v77
      %v79 = vrot.slane %v78, 2
      %v80 = vadd.f32 %v78, %v79
      %v81 = vrot.slane %v80, 1
      %v82 = vadd.f32 %v80, %v81
      %v83 = vrot.slane %v76, 4
      %v84 = vadd.f32 %v76, %v83
      %v85 = vrot.slane %v84, 2
      %v86 = vadd.f32 %v84, %v85
      %v87 = vrot.slane %v86, 1
      %v88 = vadd.f32 %v86, %v87
      %vm91 = vcmask 1041409
      %v92 = vsel %vm91, %v88, %v82
      %vm94 = vcmask 1041408
      %v95 = vsel %vm94, %v92, 0.0
      %96 = vadd.xlane.f32.xlu0 %v95
      %v97 = vpop.xlane.xlu0 %96
      %v98 = vld [vmem:[#allocation3] sm:$0xff]
      %v99 = vld [vmem:[#allocation3 + $0x8] sm:$0xff]
      %v100 = vrot.slane %v98, 4
      %v101 = vadd.f32 %v98, %v100
      %v102 = vrot.slane %v101, 2
      %v103 = vadd.f32 %v101, %v102
      %v104 = vrot.slane %v103, 1
      %v105 = vadd.f32 %v103, %v104
      %v106 = vrot.slane %v99, 4
      %v107 = vadd.f32 %v99, %v106
      %v108 = vrot.slane %v107, 2
      %v109 = vadd.f32 %v107, %v108
      %v110 = vrot.slane %v109, 1
      %v111 = vadd.f32 %v109, %v110
      %v114 = vsel %vm91, %v111, %v105
      %v116 = vsel %vm94, %v114, 0.0
      %117 = vadd.xlane.f32.xlu0 %v116
      %v118 = vpop.xlane.xlu0 %117
      %v119 = vmul.f32 %v97, 2.0
      %v120 = vadd.f32 %v119, 1.0
      %v121 = vadd.f32 %v118, 1.0
      %v122 = vrcp.pop %v121
      %v123 = vmul.f32 %v120, %v122
      %124 = vst [vmem:[#allocation9] sm:$0x3] %v123
    $region25: #{tpu_custom_call.1} parent=1 // pred_fallthru
      _
    // Predicated region
    $region26: #{tpu_custom_call.1} parent=1 // pred_check
      _
    $region27: #{tpu_custom_call.1} parent=1 // pred_check_branch
      %126 = sbr.rel (0) target = $region29
    $region28: #{tpu_custom_call.1} parent=1 // pred_region
      %s128 = ssub.s32 32, 32
      %129 = vsyncadd [#allocation6], %s128
      %s131 = sshll.u32 [#allocation9], 4
      %s132 = int_to_ptr.vmem [resolvable:$true] %s131
      %134 = dma.vmem_to_hbm [thread:$0]  %s132, 32, %s2, [#allocation6]
    $region29: #{tpu_custom_call.1} parent=1 // pred_fallthru
      _
    // Predicated region
    $region30: #{tpu_custom_call.1} parent=1 // pred_check
      _
    $region31: #{tpu_custom_call.1} parent=1 // pred_check_branch
      %136 = sbr.rel (0) target = $region33
    $region32: #{tpu_custom_call.1} parent=1 // pred_region
      %137 = dma.done [#allocation6], 32
    $region33: #{tpu_custom_call.1} parent=1 // pred_fallthru
      _
    %138 = vsyncpa [#allocation5], 1
    %139 = vsyncpa [#allocation8], 1
    %140 = vsyncpa [#allocation6], 1

</llo_original>
